<compile_context>
chip_gen: v6e
topology: v6e:2x2x1
jax: 0.10.0
libtpu: 0.0.40
codegen_flags: <defaults>
</compile_context>

<pallas_src>
import math
import numpy as np

import jax
import jax.numpy as jnp
from jax.experimental import pallas as pl
from jax.experimental.pallas import tpu as pltpu


def _round_up(x, m):
    return ((x + m - 1) // m) * m


# ----------------------------------------------------------------------------
# Parameters (PyTorch default init), with Conv1d folded into the FC weights.
# ----------------------------------------------------------------------------

def init_params(key, c_list):
    heads = list(c_list[:5])
    c_sum = sum(c_list) - c_list[-1]            # == sum(heads)
    nout = sum(heads)
    P = _round_up(c_sum, 128)
    nout_p = _round_up(nout, 128)

    keys = jax.random.split(key, 1 + 2 * len(heads))

    # Conv1d(1, 1, 3, bias=False): kaiming_uniform(a=sqrt(5)) -> U(+-1/sqrt(3))
    cb = 1.0 / math.sqrt(3.0)
    conv_w = jax.random.uniform(keys[0], (3,), jnp.float32, -cb, cb)

    # Linear(c_sum, c_i): U(+-1/sqrt(c_sum)) for weight and bias.
    lb = 1.0 / math.sqrt(c_sum)
    w_blocks, b_blocks = [], []
    for i, c in enumerate(heads):
        w = jax.random.uniform(keys[1 + 2 * i], (c, c_sum), jnp.float32, -lb, lb)
        b = jax.random.uniform(keys[2 + 2 * i], (c,), jnp.float32, -lb, lb)
        w_blocks.append(w.T)                    # (c_sum, c), y = x @ W.T
        b_blocks.append(b)
    w_cat = jnp.concatenate(w_blocks, axis=1)   # (c_sum, nout)
    b_cat = jnp.concatenate(b_blocks)           # (nout,)

    # Fold Conv1d(k=3, pad=1, no bias) into the FC slab (exact, pure VPU math):
    #   conv(x)[c] = w0*x[c-1] + w1*x[c] + w2*x[c+1]      (zero padded)
    #   conv(x) @ W == x @ W_fused,  W_fused[j] = w0*W[j+1] + w1*W[j] + w2*W[j-1]
    Wz = jnp.pad(w_cat, ((1, 1), (0, 0)))
    w_fused = conv_w[0] * Wz[2:, :] + conv_w[1] * Wz[1:-1, :] + conv_w[2] * Wz[:-2, :]

    # Lane-dense, zero-padded slabs.  Weights stored in bf16 (explicit choice:
    # halves the weight DMA/VMEM; the MXU accumulates in f32).
    w_all = (jnp.zeros((P, nout_p), jnp.bfloat16)
             .at[:c_sum, :nout].set(w_fused.astype(jnp.bfloat16)))
    b_all = jnp.zeros((1, nout_p), jnp.float32).at[0, :nout].set(b_cat)

    return {
        'w_all': w_all, 'b_all': b_all,
        # unfused copies kept only for the numpy reference check in __main__
        'conv_w': conv_w, 'w_cat': w_cat, 'b_cat': b_cat,
        'c_sum': c_sum, 'P': P, 'nout': nout, 'nout_p': nout_p,
    }


# ----------------------------------------------------------------------------
# Forward pass
# ----------------------------------------------------------------------------

def channel_att_bridge(params, t1, t2, t3, t4, t5, *,
                       lane_tile=512, materialize_expand=True):
    """Channel_Att_Bridge.forward for split_att='fc'.  t_i are NCHW tensors."""
    # TODO(synk): only the default split_att='fc' branch is implemented; the
    # 'conv' attention-head branch of the PyTorch module is not translated.
    assert lane_tile % 128 == 0
    ts = (t1, t2, t3, t4, t5)
    B = int(t1.shape[0])
    c_sizes = tuple(int(t.shape[1]) for t in ts)
    hw_sizes = tuple(int(t.shape[2]) * int(t.shape[3]) for t in ts)
    c_sum, P, nout_p = params['c_sum'], params['P'], params['nout_p']
    assert sum(c_sizes) == c_sum

    # Per-stage tiling of the flattened spatial axis: big stages get lane-dense
    # tiles of `lane_tile`, small stages are a single full-extent block.
    tiles, n_blocks, hwp_sizes = [], [], []
    for hw in hw_sizes:
        if hw <= lane_tile:
            tiles.append(hw); n_blocks.append(1); hwp_sizes.append(hw)
        else:
            hwp = _round_up(hw, lane_tile)
            tiles.append(lane_tile); n_blocks.append(hwp // lane_tile)
            hwp_sizes.append(hwp)
    N = max(n_blocks)
    multi = [i for i in range(5) if n_blocks[i] > 1]

    # NCHW -> (B, C, H*W): free reshape; zero-pad spatial to the tile grid
    # (zeros are inert for the pooling sum; division uses the true H*W).
    flats = []
    for t, c, hw, hwp in zip(ts, c_sizes, hw_sizes, hwp_sizes):
        f = t.reshape(B, c, hw)
        if hwp != hw:
            f = jnp.pad(f, ((0, 0), (0, 0), (0, hwp - hw)))
        flats.append(f)

    def in_spec(c, n_i, tile):
        if n_i == 1:
            idx = lambda b, s: (b, 0, 0)
        else:
            last = n_i - 1
            # Clamp: once this stage is exhausted the block index stops
            # changing, so Pallas keeps it resident and issues no extra DMA.
            idx = lambda b, s: (b, 0, jnp.minimum(s, last))
        return pl.BlockSpec((1, c, tile), idx)

    in_specs = [in_spec(c, n, t) for c, n, t in zip(c_sizes, n_blocks, tiles)]
    in_specs.append(pl.BlockSpec((P, nout_p), lambda b, s: (0, 0)))   # fused W (bf16)
    in_specs.append(pl.BlockSpec((1, nout_p), lambda b, s: (0, 0)))   # bias (f32)

    def kernel(*refs):
        f_refs = refs[0:5]
        w_ref, b_ref, o_ref = refs[5], refs[6], refs[7]
        acc_refs = refs[8:]                      # one f32 accumulator per tiled stage
        s = pl.program_id(1)

        if acc_refs:
            @pl.when(s == 0)
            def _():
                for a in acc_refs:
                    a[...] = jnp.zeros_like(a)

        # Steady state: per-lane partial pooling sums, plain VPU adds only.
        for a, i in zip(acc_refs, multi):
            n_i = n_blocks[i]
            if n_i == N:
                a[...] += f_refs[i][...].astype(jnp.float32)
            else:
                @pl.when(s < n_i)
                def _(a=a, fr=f_refs[i]):
                    a[...] += fr[...].astype(jnp.float32)

        # Last spatial step: cross-lane reduce once, fused conv+FC matmul,
        # sigmoid, lane-dense store.
        @pl.when(s == N - 1)
        def _():
            pooled = []
            ai = 0
            for i in range(5):
                if n_blocks[i] > 1:
                    part = acc_refs[ai][...]; ai += 1
                else:
                    part = f_refs[i][...].astype(jnp.float32)
                pooled.append(jnp.sum(part, axis=-1) * (1.0 / float(hw_sizes[i])))
            att = jnp.concatenate(pooled, axis=-1)          # (1, c_sum), in vregs
            if P > c_sum:                                   # explicit zero pad
                att = jnp.concatenate(
                    [att, jnp.zeros((att.shape[0], P - c_sum), jnp.float32)],
                    axis=-1)
            # Conv1d already folded into w_ref; bf16 operands, f32 accumulate.
            z = jnp.dot(att.astype(jnp.bfloat16), w_ref[...],
                        preferred_element_type=jnp.float32) + b_ref[...]
            o_ref[...] = (1.0 / (1.0 + jnp.exp(-z)))[:, None, :]

    fused = pl.pallas_call(
        kernel,
        out_shape=jax.ShapeDtypeStruct((B, 1, nout_p), jnp.float32),
        grid=(B, N),
        in_specs=in_specs,
        out_specs=pl.BlockSpec((1, 1, nout_p), lambda b, s: (b, 0, 0)),
        scratch_shapes=[pltpu.VMEM((1, c_sizes[i], tiles[i]), jnp.float32)
                        for i in multi],
        compiler_params=pltpu.CompilerParams(
            dimension_semantics=("parallel", "arbitrary")),
    )(*flats, params['w_all'], params['b_all'])

    fused = fused[:, 0, :]                                   # (B, nout_p)

    # split_att == 'fc' epilogue.  The expand_as is spatially constant; keep it
    # only if the caller needs materialized full-size tensors.
    outs, off = [], 0
    for t, c in zip(ts, c_sizes):
        a4 = fused[:, off:off + c][:, :, None, None]         # (B, c, 1, 1)
        off += c
        outs.append(jnp.broadcast_to(a4, t.shape) if materialize_expand else a4)
    return tuple(outs)


# ----------------------------------------------------------------------------
# Main
# ----------------------------------------------------------------------------

if __name__ == "__main__":
    c_list = [8, 16, 24, 32, 48, 64]
    B, H0 = 2, 32
    key = jax.random.PRNGKey(0)
    kp, k1, k2, k3, k4, k5 = jax.random.split(key, 6)
    tkeys = (k1, k2, k3, k4, k5)
    ts = tuple(jax.random.uniform(tkeys[i],
                                  (B, c_list[i], H0 >> i, H0 >> i),
                                  jnp.float32)
               for i in range(5))

    params = init_params(kp, c_list)
    fwd = jax.jit(lambda *args: channel_att_bridge(params, *args))
    outs = jax.block_until_ready(fwd(*ts))

    # ---- numpy reference of the PyTorch forward (split_att='fc'), unfused ----
    conv_w = np.asarray(params['conv_w'])
    W = np.asarray(params['w_cat'])                      # (c_sum, nout)
    bvec = np.asarray(params['b_cat'])                   # (nout,)
    pools = [np.asarray(t).mean(axis=(2, 3)) for t in ts]
    att = np.concatenate(pools, axis=1)                  # (B, c_sum)
    pad = np.pad(att, ((0, 0), (1, 1)))
    conv = conv_w[0] * pad[:, :-2] + conv_w[1] * pad[:, 1:-1] + conv_w[2] * pad[:, 2:]
    ref = 1.0 / (1.0 + np.exp(-(conv @ W + bvec)))       # (B, nout)

    off = 0
    for o, t in zip(outs, ts):
        c = t.shape[1]
        got = np.asarray(o)
        assert got.shape == t.shape, (got.shape, t.shape)
        assert np.all(np.isfinite(got))
        assert np.all((got > 0.0) & (got < 1.0))
        # channel attention is spatially constant after expand_as
        assert np.all(got == got[:, :, :1, :1])
        # Tolerance reflects the deliberate bf16 weight/activation choice for
        # the final 128-length contraction (f32 accumulate); pooling is exact
        # f32.  Expected post-sigmoid error ~1e-3.
        np.testing.assert_allclose(got[:, :, 0, 0], ref[:, off:off + c],
                                   rtol=3e-3, atol=3e-3)
        off += c

    print("KERNEL_OK")
</pallas_src>

<mosaic_0001>
module attributes {stable_mosaic.version = 11 : i64} {
  func.func @kernel(%arg0: i32, %arg1: i32, %arg2: memref<1x8x512xf32, #tpu.memory_space<vmem>>, %arg3: memref<1x16x256xf32, #tpu.memory_space<vmem>>, %arg4: memref<1x24x64xf32, #tpu.memory_space<vmem>>, %arg5: memref<1x32x16xf32, #tpu.memory_space<vmem>>, %arg6: memref<1x48x4xf32, #tpu.memory_space<vmem>>, %arg7: memref<128x128xbf16, #tpu.memory_space<vmem>>, %arg8: memref<1x128xf32, #tpu.memory_space<vmem>>, %arg9: memref<1x1x128xf32, #tpu.memory_space<vmem>>, %arg10: memref<1x8x512xf32, #tpu.memory_space<vmem>>) attributes {dimension_semantics = [#tpu.dimension_semantics<parallel>, #tpu.dimension_semantics<arbitrary>], iteration_bounds = array<i64: 2, 2>, scalar_prefetch = 0 : i64, scratch_operands = 1 : i64, tpu.core_type = #tpu.core_type<tc>, window_params = [{transform_indices = @transform_0, window_bounds = array<i64: 1, 8, 512>}, {transform_indices = @transform_1, window_bounds = array<i64: 1, 16, 256>}, {transform_indices = @transform_2, window_bounds = array<i64: 1, 24, 64>}, {transform_indices = @transform_3, window_bounds = array<i64: 1, 32, 16>}, {transform_indices = @transform_4, window_bounds = array<i64: 1, 48, 4>}, {pipeline_mode = #tpu.pipeline_mode<synchronous>, transform_indices = @transform_5, window_bounds = array<i64: 128, 128>}, {pipeline_mode = #tpu.pipeline_mode<synchronous>, transform_indices = @transform_6, window_bounds = array<i64: 1, 128>}, {transform_indices = @transform_7, window_bounds = array<i64: 1, 1, 128>}]} {
    %c0_i32 = arith.constant 0 : i32
    %0 = arith.cmpi eq, %arg1, %c0_i32 : i32
    %1 = arith.extui %0 : i1 to i32
    %c0_i32_0 = arith.constant 0 : i32
    %2 = arith.cmpi ne, %1, %c0_i32_0 : i32
    scf.if %2 {
      %cst = arith.constant 0.000000e+00 : f32
      %10 = vector.broadcast %cst : f32 to vector<1x8x512xf32>
      %c0_10 = arith.constant 0 : index
      %c0_11 = arith.constant 0 : index
      %c0_12 = arith.constant 0 : index
      %11 = vector.load %arg10[%c0_10, %c0_11, %c0_12] : memref<1x8x512xf32, #tpu.memory_space<vmem>>, vector<1x8x512xf32>
      tpu.vector_store %arg10[%c0_10, %c0_11, %c0_12], %10 {strides = array<i32>} : memref<1x8x512xf32, #tpu.memory_space<vmem>>, vector<1x8x512xf32>,
    } else {
    }
    %c0 = arith.constant 0 : index
    %c0_1 = arith.constant 0 : index
    %c0_2 = arith.constant 0 : index
    %3 = vector.load %arg10[%c0, %c0_1, %c0_2] : memref<1x8x512xf32, #tpu.memory_space<vmem>>, vector<1x8x512xf32>
    %c0_3 = arith.constant 0 : index
    %c0_4 = arith.constant 0 : index
    %c0_5 = arith.constant 0 : index
    %4 = vector.load %arg2[%c0_3, %c0_4, %c0_5] : memref<1x8x512xf32, #tpu.memory_space<vmem>>, vector<1x8x512xf32>
    %5 = arith.addf %3, %4 : vector<1x8x512xf32>
    %c0_6 = arith.constant 0 : index
    %c0_7 = arith.constant 0 : index
    %c0_8 = arith.constant 0 : index
    %6 = vector.load %arg10[%c0_6, %c0_7, %c0_8] : memref<1x8x512xf32, #tpu.memory_space<vmem>>, vector<1x8x512xf32>
    tpu.vector_store %arg10[%c0_6, %c0_7, %c0_8], %5 {strides = array<i32>} : memref<1x8x512xf32, #tpu.memory_space<vmem>>, vector<1x8x512xf32>,
    %c1_i32 = arith.constant 1 : i32
    %7 = arith.cmpi eq, %arg1, %c1_i32 : i32
    %8 = arith.extui %7 : i1 to i32
    %c0_i32_9 = arith.constant 0 : i32
    %9 = arith.cmpi ne, %8, %c0_i32_9 : i32
    scf.if %9 {
      %c0_10 = arith.constant 0 : index
      %c0_11 = arith.constant 0 : index
      %c0_12 = arith.constant 0 : index
      %10 = vector.load %arg10[%c0_10, %c0_11, %c0_12] : memref<1x8x512xf32, #tpu.memory_space<vmem>>, vector<1x8x512xf32>
      %cst = arith.constant dense<0.000000e+00> : vector<1x8xf32>
      %11 = vector.multi_reduction <add>, %10, %cst [2] : vector<1x8x512xf32> to vector<1x8xf32>
      %cst_13 = arith.constant 9.765625E-4 : f32
      %12 = vector.broadcast %cst_13 : f32 to vector<1x8xf32>
      %13 = arith.mulf %11, %12 : vector<1x8xf32>
      %c0_14 = arith.constant 0 : index
      %c0_15 = arith.constant 0 : index
      %c0_16 = arith.constant 0 : index
      %14 = vector.load %arg3[%c0_14, %c0_15, %c0_16] : memref<1x16x256xf32, #tpu.memory_space<vmem>>, vector<1x16x256xf32>
      %cst_17 = arith.constant dense<0.000000e+00> : vector<1x16xf32>
      %15 = vector.multi_reduction <add>, %14, %cst_17 [2] : vector<1x16x256xf32> to vector<1x16xf32>
      %cst_18 = arith.constant 3.906250e-03 : f32
      %16 = vector.broadcast %cst_18 : f32 to vector<1x16xf32>
      %17 = arith.mulf %15, %16 : vector<1x16xf32>
      %c0_19 = arith.constant 0 : index
      %c0_20 = arith.constant 0 : index
      %c0_21 = arith.constant 0 : index
      %18 = vector.load %arg4[%c0_19, %c0_20, %c0_21] : memref<1x24x64xf32, #tpu.memory_space<vmem>>, vector<1x24x64xf32>
      %cst_22 = arith.constant dense<0.000000e+00> : vector<1x24xf32>
      %19 = vector.multi_reduction <add>, %18, %cst_22 [2] : vector<1x24x64xf32> to vector<1x24xf32>
      %cst_23 = arith.constant 1.562500e-02 : f32
      %20 = vector.broadcast %cst_23 : f32 to vector<1x24xf32>
      %21 = arith.mulf %19, %20 : vector<1x24xf32>
      %c0_24 = arith.constant 0 : index
      %c0_25 = arith.constant 0 : index
      %c0_26 = arith.constant 0 : index
      %22 = vector.load %arg5[%c0_24, %c0_25, %c0_26] : memref<1x32x16xf32, #tpu.memory_space<vmem>>, vector<1x32x16xf32>
      %cst_27 = arith.constant dense<0.000000e+00> : vector<1x32xf32>
      %23 = vector.multi_reduction <add>, %22, %cst_27 [2] : vector<1x32x16xf32> to vector<1x32xf32>
      %cst_28 = arith.constant 6.250000e-02 : f32
      %24 = vector.broadcast %cst_28 : f32 to vector<1x32xf32>
      %25 = arith.mulf %23, %24 : vector<1x32xf32>
      %c0_29 = arith.constant 0 : index
      %c0_30 = arith.constant 0 : index
      %c0_31 = arith.constant 0 : index
      %26 = vector.load %arg6[%c0_29, %c0_30, %c0_31] : memref<1x48x4xf32, #tpu.memory_space<vmem>>, vector<1x48x4xf32>
      %cst_32 = arith.constant dense<0.000000e+00> : vector<1x48xf32>
      %27 = vector.multi_reduction <add>, %26, %cst_32 [2] : vector<1x48x4xf32> to vector<1x48xf32>
      %cst_33 = arith.constant 2.500000e-01 : f32
      %28 = vector.broadcast %cst_33 : f32 to vector<1x48xf32>
      %29 = arith.mulf %27, %28 : vector<1x48xf32>
      %30 = tpu.concatenate %13, %17, %21, %25, %29 in 1 : vector<1x8xf32>, vector<1x16xf32>, vector<1x24xf32>, vector<1x32xf32>, vector<1x48xf32> -> vector<1x128xf32>
      %31 = arith.truncf %30 : vector<1x128xf32> to vector<1x128xbf16>
      %c0_34 = arith.constant 0 : index
      %c0_35 = arith.constant 0 : index
      %32 = vector.load %arg7[%c0_34, %c0_35] : memref<128x128xbf16, #tpu.memory_space<vmem>>, vector<128x128xbf16>
      %cst_36 = arith.constant dense<0.000000e+00> : vector<1x128xf32>
      %33 = tpu.matmul %31, %32, %cst_36 {dimension_numbers = #tpu.dot_dimension_numbers<[1], [0], [0], [1], [0, 0, 1, 1], [], []>} : vector<1x128xbf16>, vector<128x128xbf16>, vector<1x128xf32> -> vector<1x128xf32>
      %c0_37 = arith.constant 0 : index
      %c0_38 = arith.constant 0 : index
      %34 = vector.load %arg8[%c0_37, %c0_38] : memref<1x128xf32, #tpu.memory_space<vmem>>, vector<1x128xf32>
      %35 = arith.addf %33, %34 : vector<1x128xf32>
      %cst_39 = arith.constant 0.000000e+00 : f32
      %36 = vector.broadcast %cst_39 : f32 to vector<1x128xf32>
      %37 = arith.subf %36, %35 : vector<1x128xf32>
      %38 = math.exp %37 : vector<1x128xf32>
      %cst_40 = arith.constant 1.000000e+00 : f32
      %39 = vector.broadcast %cst_40 : f32 to vector<1x128xf32>
      %40 = arith.addf %39, %38 : vector<1x128xf32>
      %cst_41 = arith.constant 1.000000e+00 : f32
      %41 = vector.broadcast %cst_41 : f32 to vector<1x128xf32>
      %42 = arith.divf %41, %40 : vector<1x128xf32>
      %43 = vector.shape_cast %42 : vector<1x128xf32> to vector<1x1x128xf32>
      %c0_42 = arith.constant 0 : index
      %c0_43 = arith.constant 0 : index
      %c0_44 = arith.constant 0 : index
      %44 = vector.load %arg9[%c0_42, %c0_43, %c0_44] : memref<1x1x128xf32, #tpu.memory_space<vmem>>, vector<1x1x128xf32>
      tpu.vector_store %arg9[%c0_42, %c0_43, %c0_44], %43 {strides = array<i32>} : memref<1x1x128xf32, #tpu.memory_space<vmem>>, vector<1x1x128xf32>,
    } else {
    }
    return
  }
  func.func @transform_0(%arg0: i32, %arg1: i32) -> (i32, i32, i32) {
    %c1_i32 = arith.constant 1 : i32
    %0 = arith.minsi %arg1, %c1_i32 : i32
    %c0_i32 = arith.constant 0 : i32
    %c0_i32_0 = arith.constant 0 : i32
    return %arg0, %c0_i32, %0 : i32, i32, i32
  }
  func.func @transform_1(%arg0: i32, %arg1: i32) -> (i32, i32, i32) {
    %c0_i32 = arith.constant 0 : i32
    %c0_i32_0 = arith.constant 0 : i32
    %c0_i32_1 = arith.constant 0 : i32
    return %arg0, %c0_i32, %c0_i32_0 : i32, i32, i32
  }
  func.func @transform_2(%arg0: i32, %arg1: i32) -> (i32, i32, i32) {
    %c0_i32 = arith.constant 0 : i32
    %c0_i32_0 = arith.constant 0 : i32
    %c0_i32_1 = arith.constant 0 : i32
    return %arg0, %c0_i32, %c0_i32_0 : i32, i32, i32
  }
  func.func @transform_3(%arg0: i32, %arg1: i32) -> (i32, i32, i32) {
    %c0_i32 = arith.constant 0 : i32
    %c0_i32_0 = arith.constant 0 : i32
    %c0_i32_1 = arith.constant 0 : i32
    return %arg0, %c0_i32, %c0_i32_0 : i32, i32, i32
  }
  func.func @transform_4(%arg0: i32, %arg1: i32) -> (i32, i32, i32) {
    %c0_i32 = arith.constant 0 : i32
    %c0_i32_0 = arith.constant 0 : i32
    %c0_i32_1 = arith.constant 0 : i32
    return %arg0, %c0_i32, %c0_i32_0 : i32, i32, i32
  }
  func.func @transform_5(%arg0: i32, %arg1: i32) -> (i32, i32) {
    %c0_i32 = arith.constant 0 : i32
    %c0_i32_0 = arith.constant 0 : i32
    %c0_i32_1 = arith.constant 0 : i32
    return %c0_i32, %c0_i32_0 : i32, i32
  }
  func.func @transform_6(%arg0: i32, %arg1: i32) -> (i32, i32) {
    %c0_i32 = arith.constant 0 : i32
    %c0_i32_0 = arith.constant 0 : i32
    %c0_i32_1 = arith.constant 0 : i32
    return %c0_i32, %c0_i32_0 : i32, i32
  }
  func.func @transform_7(%arg0: i32, %arg1: i32) -> (i32, i32, i32) {
    %c0_i32 = arith.constant 0 : i32
    %c0_i32_0 = arith.constant 0 : i32
    %c0_i32_1 = arith.constant 0 : i32
    return %arg0, %c0_i32, %c0_i32_0 : i32, i32, i32
  }
}

</mosaic_0001>

<llo_original>
// kernel: _lambda_.1
$region0: #{_lambda_.1}
  #allocation0 [shape = 'u32[]', space=smem, size = 0x4, offset = 0x4, fixed_abs, tag = 'smem constant byte address 0x4 - core index']
  #allocation1 [shape = 'u32[144,128]{1,0:T(1,128)}', space=vmem, size = 0x12000, scoped, tag = 'internal scratch']
  #allocation2 [shape = 'f32[1,8,512]{2,1,0:T(8,128)}', space=vmem, size = 0x4000, scoped, tag = 'scratch operand']
  %s0 = inlined_call_operand.vmem [shape: f32[2,8,1024], index: 0, kind: input, shape index: {}]
  %s1 = inlined_call_operand.vmem [shape: f32[2,16,256], index: 1, kind: input, shape index: {}]
  %s2 = inlined_call_operand.vmem [shape: f32[2,24,64], index: 2, kind: input, shape index: {}]
  %s3 = inlined_call_operand.vmem [shape: f32[2,32,16], index: 3, kind: input, shape index: {}]
  %s4 = inlined_call_operand.vmem [shape: f32[2,48,4], index: 4, kind: input, shape index: {}]
  %s5 = inlined_call_operand.vmem [shape: bf16[128,128], index: 5, kind: input, shape index: {}]
  %s6 = inlined_call_operand.vmem [shape: f32[1,128], index: 6, kind: input, shape index: {}]
  %s7 = inlined_call_operand.vmem [shape: f32[2,1,128], index: 7, kind: output, shape index: {}]
  %s8 = sld [smem:[#allocation0]]
  $region69: #{_lambda_.1} parent=0
    _
  %s10 = ssub.s32 1, %s8
  %s11 = scalar_select 0, %s10, %s8
  loop: start=0, step=1, limit=6
  $region2: #{_lambda_.1} parent=0 // loop_pre_header
    _
  $region3: #{_lambda_.1} parent=0 // loop_header
    %s13 = sphi 0, %s17
    %p14 = scmp.ge.s32.totalorder %s13, 6
    %s20 = sphi 0, %s32
    %s21 = sphi 0, %s28
    %s22 = sphi 0, %s20
    %s23 = sphi 0, %s21
    %s24 = sphi 0, %s22
    %s25 = sphi 0, %s23
    %s41 = sphi 0, %s43
    %s44 = sphi 0, %s41
    %s45 = sphi 0, %s44
    %s61 = sphi 0, %s45
    %s67 = sphi 0, %s69
    %s70 = sphi 0, %s67
    %s71 = sphi 0, %s70
    %s87 = sphi 0, %s71
    %s93 = sphi 0, %s95
    %s96 = sphi 0, %s93
    %s97 = sphi 0, %s96
    %s113 = sphi 0, %s97
    %s119 = sphi 0, %s121
    %s122 = sphi 0, %s119
    %s123 = sphi 0, %s122
    %s139 = sphi 0, %s123
    %s145 = sphi 0, %s147
    %s148 = sphi 0, %s145
    %s149 = sphi 0, %s148
    %s165 = sphi 0, %s149
    %s169 = sphi 0, %s169
    %s171 = sphi 0, %s169
    %s172 = sphi 0, %s171
    %s186 = sphi 0, %s172
    %s190 = sphi 0, %s190
    %s192 = sphi 0, %s190
    %s193 = sphi 0, %s192
    %s207 = sphi 0, %s193
    %s213 = sphi 0, %s215
    %s216 = sphi 0, %s213
    %s217 = sphi 0, %s216
    %s233 = sphi 0, %s217
  $region4: #{_lambda_.1} parent=0 // loop_header_branch
    %16 = sbr.rel (%p14) target = $region8
  $region5: #{_lambda_.1} parent=0 // loop_body
    %s18 = ssub.s32 %s13, 1
    %s19 = ssub.s32 %s13, 2
    %s26 = sadd.s32 1, %s21
    %p27 = scmp.ge.s32.totalorder %s26, 2
    %s28 = scalar_select %p27, 0, %s26
    %s29 = sadd.s32 1, %s20
    %s30 = scalar_select %p27, %s29, %s20
    %p31 = scmp.ge.s32.totalorder %s30, 2
    %s32 = scalar_select %p31, 0, %s30
    %p33 = scmp.lt.s32.totalorder %s21, 1
    %s34 = scalar_select %p33, %s21, 1
    %p35 = scmp.lt.s32.totalorder %s28, 1
    %s36 = scalar_select %p35, %s28, 1
    %s37 = ssub.s32 %s20, %s32
    %s38 = ssub.s32 %s34, %s36
    %s39 = sor.u32 %s37, %s38
    %p40 = scmp.eq.s32.totalorder %s39, 0
    %s42 = sadd.s32 %s41, 1
    %s43 = scalar_select %p40, %s41, %s42
    %p46 = pneg %p40
    %p47 = scmp.eq.s32.totalorder %s13, 3
    %p48 = por %p46, %p47
    %p49 = scmp.ne.s32.totalorder %s41, %s44
    %p50 = scmp.eq.s32.totalorder %s13, 0
    %p51 = por %p49, %p50
    %p52 = scmp.ne.s32.totalorder %s41, %s44
    %p53 = scmp.eq.s32.totalorder %s18, 3
    %p54 = por %p52, %p53
    %p55 = scmp.ne.s32.totalorder %s44, %s45
    %p56 = scmp.eq.s32.totalorder %s18, 0
    %p57 = por %p55, %p56
    %p58 = scmp.ne.s32.totalorder %s44, %s45
    %p59 = scmp.eq.s32.totalorder %s19, 3
    %p60 = por %p58, %p59
    %p62 = scmp.ne.s32.totalorder %s45, %s61
    %p63 = scmp.eq.s32.totalorder %s19, 0
    %p64 = por %p62, %p63
    %s65 = ssub.s32 %s20, %s32
    %p66 = scmp.eq.s32.totalorder %s65, 0
    %s68 = sadd.s32 %s67, 1
    %s69 = scalar_select %p66, %s67, %s68
    %p72 = pneg %p66
    %p73 = scmp.eq.s32.totalorder %s13, 3
    %p74 = por %p72, %p73
    %p75 = scmp.ne.s32.totalorder %s67, %s70
    %p76 = scmp.eq.s32.totalorder %s13, 0
    %p77 = por %p75, %p76
    %p78 = scmp.ne.s32.totalorder %s67, %s70
    %p79 = scmp.eq.s32.totalorder %s18, 3
    %p80 = por %p78, %p79
    %p81 = scmp.ne.s32.totalorder %s70, %s71
    %p82 = scmp.eq.s32.totalorder %s18, 0
    %p83 = por %p81, %p82
    %p84 = scmp.ne.s32.totalorder %s70, %s71
    %p85 = scmp.eq.s32.totalorder %s19, 3
    %p86 = por %p84, %p85
    %p88 = scmp.ne.s32.totalorder %s71, %s87
    %p89 = scmp.eq.s32.totalorder %s19, 0
    %p90 = por %p88, %p89
    %s91 = ssub.s32 %s20, %s32
    %p92 = scmp.eq.s32.totalorder %s91, 0
    %s94 = sadd.s32 %s93, 1
    %s95 = scalar_select %p92, %s93, %s94
    %p98 = pneg %p92
    %p99 = scmp.eq.s32.totalorder %s13, 3
    %p100 = por %p98, %p99
    %p101 = scmp.ne.s32.totalorder %s93, %s96
    %p102 = scmp.eq.s32.totalorder %s13, 0
    %p103 = por %p101, %p102
    %p104 = scmp.ne.s32.totalorder %s93, %s96
    %p105 = scmp.eq.s32.totalorder %s18, 3
    %p106 = por %p104, %p105
    %p107 = scmp.ne.s32.totalorder %s96, %s97
    %p108 = scmp.eq.s32.totalorder %s18, 0
    %p109 = por %p107, %p108
    %p110 = scmp.ne.s32.totalorder %s96, %s97
    %p111 = scmp.eq.s32.totalorder %s19, 3
    %p112 = por %p110, %p111
    %p114 = scmp.ne.s32.totalorder %s97, %s113
    %p115 = scmp.eq.s32.totalorder %s19, 0
    %p116 = por %p114, %p115
    %s117 = ssub.s32 %s20, %s32
    %p118 = scmp.eq.s32.totalorder %s117, 0
    %s120 = sadd.s32 %s119, 1
    %s121 = scalar_select %p118, %s119, %s120
    %p124 = pneg %p118
    %p125 = scmp.eq.s32.totalorder %s13, 3
    %p126 = por %p124, %p125
    %p127 = scmp.ne.s32.totalorder %s119, %s122
    %p128 = scmp.eq.s32.totalorder %s13, 0
    %p129 = por %p127, %p128
    %p130 = scmp.ne.s32.totalorder %s119, %s122
    %p131 = scmp.eq.s32.totalorder %s18, 3
    %p132 = por %p130, %p131
    %p133 = scmp.ne.s32.totalorder %s122, %s123
    %p134 = scmp.eq.s32.totalorder %s18, 0
    %p135 = por %p133, %p134
    %p136 = scmp.ne.s32.totalorder %s122, %s123
    %p137 = scmp.eq.s32.totalorder %s19, 3
    %p138 = por %p136, %p137
    %p140 = scmp.ne.s32.totalorder %s123, %s139
    %p141 = scmp.eq.s32.totalorder %s19, 0
    %p142 = por %p140, %p141
    %s143 = ssub.s32 %s20, %s32
    %p144 = scmp.eq.s32.totalorder %s143, 0
    %s146 = sadd.s32 %s145, 1
    %s147 = scalar_select %p144, %s145, %s146
    %p150 = pneg %p144
    %p151 = scmp.eq.s32.totalorder %s13, 3
    %p152 = por %p150, %p151
    %p153 = scmp.ne.s32.totalorder %s145, %s148
    %p154 = scmp.eq.s32.totalorder %s13, 0
    %p155 = por %p153, %p154
    %p156 = scmp.ne.s32.totalorder %s145, %s148
    %p157 = scmp.eq.s32.totalorder %s18, 3
    %p158 = por %p156, %p157
    %p159 = scmp.ne.s32.totalorder %s148, %s149
    %p160 = scmp.eq.s32.totalorder %s18, 0
    %p161 = por %p159, %p160
    %p162 = scmp.ne.s32.totalorder %s148, %s149
    %p163 = scmp.eq.s32.totalorder %s19, 3
    %p164 = por %p162, %p163
    %p166 = scmp.ne.s32.totalorder %s149, %s165
    %p167 = scmp.eq.s32.totalorder %s19, 0
    %p168 = por %p166, %p167
    %s170 = sadd.s32 %s169, 1
    %p173 = scmp.eq.s32.totalorder %s13, 3
    %p174 = scmp.ne.s32.totalorder %s169, %s171
    %p175 = scmp.eq.s32.totalorder %s13, 0
    %p176 = por %p174, %p175
    %p177 = scmp.ne.s32.totalorder %s169, %s171
    %p178 = scmp.eq.s32.totalorder %s18, 3
    %p179 = por %p177, %p178
    %p180 = scmp.ne.s32.totalorder %s171, %s172
    %p181 = scmp.eq.s32.totalorder %s18, 0
    %p182 = por %p180, %p181
    %p183 = scmp.ne.s32.totalorder %s171, %s172
    %p184 = scmp.eq.s32.totalorder %s19, 3
    %p185 = por %p183, %p184
    %p187 = scmp.ne.s32.totalorder %s172, %s186
    %p188 = scmp.eq.s32.totalorder %s19, 0
    %p189 = por %p187, %p188
    %s191 = sadd.s32 %s190, 1
    %p194 = scmp.eq.s32.totalorder %s13, 3
    %p195 = scmp.ne.s32.totalorder %s190, %s192
    %p196 = scmp.eq.s32.totalorder %s13, 0
    %p197 = por %p195, %p196
    %p198 = scmp.ne.s32.totalorder %s190, %s192
    %p199 = scmp.eq.s32.totalorder %s18, 3
    %p200 = por %p198, %p199
    %p201 = scmp.ne.s32.totalorder %s192, %s193
    %p202 = scmp.eq.s32.totalorder %s18, 0
    %p203 = por %p201, %p202
    %p204 = scmp.ne.s32.totalorder %s192, %s193
    %p205 = scmp.eq.s32.totalorder %s19, 3
    %p206 = por %p204, %p205
    %p208 = scmp.ne.s32.totalorder %s193, %s207
    %p209 = scmp.eq.s32.totalorder %s19, 0
    %p210 = por %p208, %p209
    %s211 = ssub.s32 %s20, %s32
    %p212 = scmp.eq.s32.totalorder %s211, 0
    %s214 = sadd.s32 %s213, 1
    %s215 = scalar_select %p212, %s213, %s214
    %p218 = pneg %p212
    %p219 = scmp.eq.s32.totalorder %s13, 3
    %p220 = por %p218, %p219
    %p221 = scmp.ne.s32.totalorder %s213, %s216
    %p222 = scmp.eq.s32.totalorder %s13, 0
    %p223 = por %p221, %p222
    %p224 = scmp.ne.s32.totalorder %s213, %s216
    %p225 = scmp.eq.s32.totalorder %s18, 3
    %p226 = por %p224, %p225
    %p227 = scmp.ne.s32.totalorder %s216, %s217
    %p228 = scmp.eq.s32.totalorder %s18, 0
    %p229 = por %p227, %p228
    %p230 = scmp.ne.s32.totalorder %s216, %s217
    %p231 = scmp.eq.s32.totalorder %s19, 3
    %p232 = por %p230, %p231
    %p234 = scmp.ne.s32.totalorder %s217, %s233
    %p235 = scmp.eq.s32.totalorder %s19, 0
    %p236 = por %p234, %p235
    %p237 = scmp.le.s32.totalorder 1, %s13
    %p238 = scmp.lt.s32.totalorder %s13, 5
    %p239 = pnand %p237, %p238
    %p240 = pneg %p239
    // Predicated region
    $region9: #{_lambda_.1} parent=5 // pred_check
      _
    $region10: #{_lambda_.1} parent=5 // pred_check_branch
      %242 = sbr.rel (%p239) target = $region12
    $region11: #{_lambda_.1} parent=5 // pred_region
      %s243 = ssub.s32 %s13, 1
      // Predicated region
      $region13: #{_lambda_.1} parent=11 // pred_check
        %p244 = pneg %p182
      $region14: #{_lambda_.1} parent=11 // pred_check_branch
        %246 = sbr.rel (%p244) target = $region16
      $region15: #{_lambda_.1} parent=11 // pred_region
        _
      $region16: #{_lambda_.1} parent=11 // pred_fallthru
        _
      // Predicated region
      $region17: #{_lambda_.1} parent=11 // pred_check
        %p247 = pneg %p203
      $region18: #{_lambda_.1} parent=11 // pred_check_branch
        %249 = sbr.rel (%p247) target = $region20
      $region19: #{_lambda_.1} parent=11 // pred_region
        _
      $region20: #{_lambda_.1} parent=11 // pred_fallthru
        _
    $region12: #{_lambda_.1} parent=5 // pred_fallthru
      _
    %p250 = scmp.lt.s32.totalorder %s13, 4
    // Predicated region
    $region21: #{_lambda_.1} parent=5 // pred_check
      %p251 = pneg %p250
    $region22: #{_lambda_.1} parent=5 // pred_check_branch
      %253 = sbr.rel (%p251) target = $region24
    $region23: #{_lambda_.1} parent=5 // pred_region
      // Predicated region
      $region25: #{_lambda_.1} parent=23 // pred_check
        %p254 = pneg %p51
      $region26: #{_lambda_.1} parent=23 // pred_check_branch
        %256 = sbr.rel (%p254) target = $region28
      $region27: #{_lambda_.1} parent=23 // pred_region
        %p257 = scmp.lt.s32.totalorder %s21, 1
        %s258 = scalar_select %p257, %s21, 1
        %s259 = smul.u32 4, %s258
        %p260 = scmp.lt.s32.totalorder %s20, 1
        %s261 = scalar_select %p260, %s20, 1
        %p262 = scmp.lt.s32.totalorder %s259, 7
        %s263 = scalar_select %p262, %s259, 7
        %s264 = smul.addr %s261, 8
        %s265 = sadd.s32 %s263, %s264
        %s266 = smul.addr %s265, 8
        %s267 = scalar_lea.vmem %s0, %s266
        %p268 = scmp.lt.s32.totalorder %s21, 1
        %s269 = scalar_select %p268, %s21, 1
        %s270 = smul.u32 4, %s269
      $region28: #{_lambda_.1} parent=23 // pred_fallthru
        _
      // Predicated region
      $region29: #{_lambda_.1} parent=23 // pred_check
        %p271 = pneg %p77
      $region30: #{_lambda_.1} parent=23 // pred_check_branch
        %273 = sbr.rel (%p271) target = $region32
      $region31: #{_lambda_.1} parent=23 // pred_region
        %p274 = scmp.lt.s32.totalorder %s20, 1
        %s275 = scalar_select %p274, %s20, 1
        %s276 = smul.addr %s275, 4
        %s277 = smul.addr %s276, 8
        %s278 = scalar_lea.vmem %s1, %s277
      $region32: #{_lambda_.1} parent=23 // pred_fallthru
        _
      // Predicated region
      $region33: #{_lambda_.1} parent=23 // pred_check
        %p279 = pneg %p103
      $region34: #{_lambda_.1} parent=23 // pred_check_branch
        %281 = sbr.rel (%p279) target = $region36
      $region35: #{_lambda_.1} parent=23 // pred_region
        %p282 = scmp.lt.s32.totalorder %s20, 1
        %s283 = scalar_select %p282, %s20, 1
        %s284 = smul.addr %s283, 3
        %s285 = smul.addr %s284, 8
        %s286 = scalar_lea.vmem %s2, %s285
      $region36: #{_lambda_.1} parent=23 // pred_fallthru
        _
      // Predicated region
      $region37: #{_lambda_.1} parent=23 // pred_check
        %p287 = pneg %p129
      $region38: #{_lambda_.1} parent=23 // pred_check_branch
        %289 = sbr.rel (%p287) target = $region40
      $region39: #{_lambda_.1} parent=23 // pred_region
        %p290 = scmp.lt.s32.totalorder %s20, 1
        %s291 = scalar_select %p290, %s20, 1
        %s292 = smul.addr %s291, 4
        %s293 = smul.addr %s292, 8
        %s294 = scalar_lea.vmem %s3, %s293
      $region40: #{_lambda_.1} parent=23 // pred_fallthru
        _
      // Predicated region
      $region41: #{_lambda_.1} parent=23 // pred_check
        %p295 = pneg %p155
      $region42: #{_lambda_.1} parent=23 // pred_check_branch
        %297 = sbr.rel (%p295) target = $region44
      $region43: #{_lambda_.1} parent=23 // pred_region
        %p298 = scmp.lt.s32.totalorder %s20, 1
        %s299 = scalar_select %p298, %s20, 1
        %s300 = smul.addr %s299, 6
        %s301 = smul.addr %s300, 8
        %s302 = scalar_lea.vmem %s4, %s301
      $region44: #{_lambda_.1} parent=23 // pred_fallthru
        _
    $region24: #{_lambda_.1} parent=5 // pred_fallthru
      _
    %p303 = scmp.le.s32.totalorder 1, %s13
    %p304 = scmp.lt.s32.totalorder %s13, 5
    %p305 = pnand %p303, %p304
    %p306 = pneg %p305
    // Predicated region
    $region45: #{_lambda_.1} parent=5 // pred_check
      _
    $region46: #{_lambda_.1} parent=5 // pred_check_branch
      %308 = sbr.rel (%p305) target = $region48
    $region47: #{_lambda_.1} parent=5 // pred_region
      %s309 = ssub.s32 %s13, 1
      %p310 = scmp.lt.s32.totalorder %s23, 1
      %s311 = scalar_select %p310, %s23, 1
      %s312 = smul.u32 4, %s311
      %p313 = scmp.lt.s32.totalorder %s22, 1
      %s314 = scalar_select %p313, %s22, 1
      %p315 = scmp.lt.s32.totalorder %s312, 7
      %s316 = scalar_select %p315, %s312, 7
      %s317 = smul.addr %s314, 8
      %s318 = sadd.s32 %s316, %s317
      %s319 = smul.addr %s318, 8
      %s320 = scalar_lea.vmem %s0, %s319
      %p321 = pneg %p57
      %p322 = pneg %p54
      %p323 = scmp.lt.s32.totalorder %s22, 1
      %s324 = scalar_select %p323, %s22, 1
      %s325 = smul.addr %s324, 4
      %s326 = smul.addr %s325, 8
      %s327 = scalar_lea.vmem %s1, %s326
      %p328 = pneg %p83
      %p329 = pneg %p80
      %p330 = scmp.lt.s32.totalorder %s22, 1
      %s331 = scalar_select %p330, %s22, 1
      %s332 = smul.addr %s331, 3
      %s333 = smul.addr %s332, 8
      %s334 = scalar_lea.vmem %s2, %s333
      %p335 = pneg %p109
      %p336 = pneg %p106
      %p337 = scmp.lt.s32.totalorder %s22, 1
      %s338 = scalar_select %p337, %s22, 1
      %s339 = smul.addr %s338, 4
      %s340 = smul.addr %s339, 8
      %s341 = scalar_lea.vmem %s3, %s340
      %p342 = pneg %p135
      %p343 = pneg %p132
      %p344 = scmp.lt.s32.totalorder %s22, 1
      %s345 = scalar_select %p344, %s22, 1
      %s346 = smul.addr %s345, 6
      %s347 = smul.addr %s346, 8
      %s348 = scalar_lea.vmem %s4, %s347
      %p349 = pneg %p161
      %p350 = pneg %p158
      %p351 = pneg %p182
      %p352 = pneg %p179
      %p353 = pneg %p203
      %p354 = pneg %p200
      %p355 = pneg %p229
      %p356 = pneg %p226
      %p357 = scmp.lt.s32.totalorder %s22, 1
      %s358 = scalar_select %p357, %s22, 1
      %s359 = scalar_lea.vmem %s7, %s358
      %p360 = scmp.lt.s32.totalorder %s23, 1
      %s361 = scalar_select %p360, %s23, 1
      %s362 = smul.u32 4, %s361
      %p363 = scmp.lt.s32.totalorder %s22, 1
      %s364 = scalar_select %p363, %s22, 1
      %p365 = scmp.lt.s32.totalorder %s362, 7
      %s366 = scalar_select %p365, %s362, 7
      %s367 = smul.addr %s364, 8
      %s368 = sadd.s32 %s366, %s367
      %s369 = smul.addr %s368, 8
      %s370 = scalar_lea.vmem %s0, %s369
      %p371 = scmp.lt.s32.totalorder %s23, 1
      %s372 = scalar_select %p371, %s23, 1
      %s373 = smul.u32 4, %s372
      %p374 = scmp.lt.s32.totalorder %s22, 1
      %s375 = scalar_select %p374, %s22, 1
      %s376 = smul.addr %s375, 4
      %s377 = smul.addr %s376, 8
      %s378 = scalar_lea.vmem %s1, %s377
      %p379 = scmp.lt.s32.totalorder %s22, 1
      %s380 = scalar_select %p379, %s22, 1
      %s381 = smul.addr %s380, 3
      %s382 = smul.addr %s381, 8
      %s383 = scalar_lea.vmem %s2, %s382
      %p384 = scmp.lt.s32.totalorder %s22, 1
      %s385 = scalar_select %p384, %s22, 1
      %s386 = smul.addr %s385, 4
      %s387 = smul.addr %s386, 8
      %s388 = scalar_lea.vmem %s3, %s387
      %p389 = scmp.lt.s32.totalorder %s22, 1
      %s390 = scalar_select %p389, %s22, 1
      %s391 = smul.addr %s390, 6
      %s392 = smul.addr %s391, 8
      %s393 = scalar_lea.vmem %s4, %s392
      %p394 = scmp.lt.s32.totalorder %s22, 1
      %s395 = scalar_select %p394, %s22, 1
      %s396 = scalar_lea.vmem %s7, %s395
      %p398 = scmp.eq.s32.totalorder %s23, 0
      // Predicated region
      $region49: #{_lambda_.1} parent=47 // pred_check
        %p399 = pneg %p398
      $region50: #{_lambda_.1} parent=47 // pred_check_branch
        %401 = sbr.rel (%p399) target = $region52
      $region51: #{_lambda_.1} parent=47 // pred_region
        %402 = vst [vmem:[#allocation2] sm:$0xff] 0.0
        %403 = vst [vmem:[#allocation2 + $0x8] sm:$0xff] 0.0
        %404 = vst [vmem:[#allocation2 + $0x10] sm:$0xff] 0.0
        %405 = vst [vmem:[#allocation2 + $0x18] sm:$0xff] 0.0
      $region52: #{_lambda_.1} parent=47 // pred_fallthru
        _
      %v406 = vld [vmem:[#allocation2] sm:$0xff]
      %v407 = vld [vmem:[#allocation2 + $0x8] sm:$0xff]
      %v408 = vld [vmem:[#allocation2 + $0x10] sm:$0xff]
      %v409 = vld [vmem:[#allocation2 + $0x18] sm:$0xff]
      %v410 = vld [vmem:[%s370] sm:$0xff]
      %v411 = vld [vmem:[%s370 + $0x8] sm:$0xff]
      %v412 = vld [vmem:[%s370 + $0x10] sm:$0xff]
      %v413 = vld [vmem:[%s370 + $0x18] sm:$0xff]
      %v414 = vadd.f32 %v406, %v410
      %v415 = vadd.f32 %v407, %v411
      %v416 = vadd.f32 %v408, %v412
      %v417 = vadd.f32 %v409, %v413
      %418 = vst [vmem:[#allocation2] sm:$0xff] %v414
      %419 = vst [vmem:[#allocation2 + $0x8] sm:$0xff] %v415
      %420 = vst [vmem:[#allocation2 + $0x10] sm:$0xff] %v416
      %421 = vst [vmem:[#allocation2 + $0x18] sm:$0xff] %v417
      %p422 = scmp.eq.s32.totalorder %s23, 1
      // Predicated region
      $region53: #{_lambda_.1} parent=47 // pred_check
        %p423 = pneg %p422
      $region54: #{_lambda_.1} parent=47 // pred_check_branch
        %425 = sbr.rel (%p423) target = $region56
      $region55: #{_lambda_.1} parent=47 // pred_region
        %v426 = vld [vmem:[#allocation2] sm:$0xff]
        %v427 = vld [vmem:[#allocation2 + $0x8] sm:$0xff]
        %v428 = vld [vmem:[#allocation2 + $0x10] sm:$0xff]
        %v429 = vld [vmem:[#allocation2 + $0x18] sm:$0xff]
        %v430 = vadd.f32 %v426, %v427
        %v431 = vadd.f32 %v430, %v428
        %v432 = vadd.f32 %v431, %v429
        %433 = vadd.xlane.f32.xlu0 %v432
        %v434 = vpop.xlane.xlu0 %433
        %v435 = vmul.f32 %v434, 0.0009765625
        %v436 = vld [vmem:[%s378] sm:$0xff]
        %v437 = vld [vmem:[%s378 + $0x8] sm:$0xff]
        %v438 = vld [vmem:[%s378 + $0x10] sm:$0xff]
        %v439 = vld [vmem:[%s378 + $0x18] sm:$0xff]
        %v440 = vadd.f32 %v436, %v437
        %441 = vadd.xlane.f32.xlu0 %v440
        %v442 = vpop.xlane.xlu0 %441
        %v443 = vadd.f32 %v438, %v439
        %444 = vadd.xlane.f32.xlu0 %v443
        %v445 = vpop.xlane.xlu0 %444
        %v446 = vmul.f32 %v442, 0.00390625
        %v447 = vmul.f32 %v445, 0.00390625
        %v448 = vld [vmem:[%s383] sm:$0xff]
        %v449 = vld [vmem:[%s383 + $0x8] sm:$0xff]
        %v450 = vld [vmem:[%s383 + $0x10] sm:$0xff]
        %vm451 = vcmask 523264
        %v452 = vsel %vm451, %v448, 0.0
        %453 = vadd.xlane.f32.xlu0 %v452
        %v454 = vpop.xlane.xlu0 %453
        %v455 = vsel %vm451, %v449, 0.0
        %456 = vadd.xlane.f32.xlu0 %v455
        %v457 = vpop.xlane.xlu0 %456
        %v458 = vsel %vm451, %v450, 0.0
        %459 = vadd.xlane.f32.xlu0 %v458
        %v460 = vpop.xlane.xlu0 %459
        %v461 = vmul.f32 %v454, 0.015625
        %v462 = vmul.f32 %v457, 0.015625
        %v463 = vmul.f32 %v460, 0.015625
        %v464 = vld [vmem:[%s388] sm:$0xff]
        %v465 = vld [vmem:[%s388 + $0x8] sm:$0xff]
        %v466 = vld [vmem:[%s388 + $0x10] sm:$0xff]
        %v467 = vld [vmem:[%s388 + $0x18] sm:$0xff]
        %vm468 = vcmask 130048
        %v469 = vsel %vm468, %v464, 0.0
        %470 = vadd.xlane.f32.xlu0 %v469
        %v471 = vpop.xlane.xlu0 %470
        %v472 = vsel %vm468, %v465, 0.0
        %473 = vadd.xlane.f32.xlu0 %v472
        %v474 = vpop.xlane.xlu0 %473
        %v475 = vsel %vm468, %v466, 0.0
        %476 = vadd.xlane.f32.xlu0 %v475
        %v477 = vpop.xlane.xlu0 %476
        %v478 = vsel %vm468, %v467, 0.0
        %479 = vadd.xlane.f32.xlu0 %v478
        %v480 = vpop.xlane.xlu0 %479
        %v481 = vmul.f32 %v471, 0.0625
        %v482 = vmul.f32 %v474, 0.0625
        %v483 = vmul.f32 %v477, 0.0625
        %v484 = vmul.f32 %v480, 0.0625
        %v485 = vld [vmem:[%s393] sm:$0xff]
        %v486 = vld [vmem:[%s393 + $0x8] sm:$0xff]
        %v487 = vld [vmem:[%s393 + $0x10] sm:$0xff]
        %v488 = vld [vmem:[%s393 + $0x18] sm:$0xff]
        %v489 = vld [vmem:[%s393 + $0x20] sm:$0xff]
        %v490 = vld [vmem:[%s393 + $0x28] sm:$0xff]
        %vm491 = vcmask 31744
        %v492 = vsel %vm491, %v485, 0.0
        %493 = vadd.xlane.f32.xlu0 %v492
        %v494 = vpop.xlane.xlu0 %493
        %v495 = vsel %vm491, %v486, 0.0
        %496 = vadd.xlane.f32.xlu0 %v495
        %v497 = vpop.xlane.xlu0 %496
        %v498 = vsel %vm491, %v487, 0.0
        %499 = vadd.xlane.f32.xlu0 %v498
        %v500 = vpop.xlane.xlu0 %499
        %v501 = vsel %vm491, %v488, 0.0
        %502 = vadd.xlane.f32.xlu0 %v501
        %v503 = vpop.xlane.xlu0 %502
        %v504 = vsel %vm491, %v489, 0.0
        %505 = vadd.xlane.f32.xlu0 %v504
        %v506 = vpop.xlane.xlu0 %505
        %v507 = vsel %vm491, %v490, 0.0
        %508 = vadd.xlane.f32.xlu0 %v507
        %v509 = vpop.xlane.xlu0 %508
        %v510 = vmul.f32 %v494, 0.25
        %v511 = vmul.f32 %v497, 0.25
        %v512 = vmul.f32 %v500, 0.25
        %v513 = vmul.f32 %v503, 0.25
        %v514 = vmul.f32 %v506, 0.25
        %v515 = vmul.f32 %v509, 0.25
        %v517 = vlaneseq
        %v518 = vand.u32 %v517, 127
        %v519 = vlaneseq
        %v520 = vshrl.u32 %v519, 7
        %v521 = vsub.s32 %v518, %v520
        %v522 = vrot.slane %v435, %v521
        %v526 = vadd.s32 %v518, 4294967288
        %v527 = vlaneseq
        %v528 = vshrl.u32 %v527, 7
        %v529 = vsub.s32 %v526, %v528
        %v530 = vrot.slane %v446, %v529
        %v531 = vadd.s32 %v518, 4294967280
        %v532 = vlaneseq
        %v533 = vshrl.u32 %v532, 7
        %v534 = vsub.s32 %v531, %v533
        %v535 = vrot.slane %v447, %v534
        %vm536 = vcmask 195712
        %v537 = vsel %vm536, %v535, %v530
        %v542 = vadd.s32 %v518, 4294967272
        %v543 = vlaneseq
        %v544 = vshrl.u32 %v543, 7
        %v545 = vsub.s32 %v542, %v544
        %v546 = vrot.slane %v461, %v545
        %v547 = vadd.s32 %v518, 4294967264
        %v548 = vlaneseq
        %v549 = vshrl.u32 %v548, 7
        %v550 = vsub.s32 %v547, %v549
        %v551 = vrot.slane %v462, %v550
        %vm552 = vcmask 326912
        %v553 = vsel %vm552, %v551, %v546
        %v554 = vadd.s32 %v518, 4294967256
        %v555 = vlaneseq
        %v556 = vshrl.u32 %v555, 7
        %v557 = vsub.s32 %v554, %v556
        %v558 = vrot.slane %v463, %v557
        %vm559 = vcmask 392512
        %v560 = vsel %vm559, %v558, %v553
        %v566 = vadd.s32 %v518, 4294967248
        %v567 = vlaneseq
        %v568 = vshrl.u32 %v567, 7
        %v569 = vsub.s32 %v566, %v568
        %v570 = vrot.slane %v481, %v569
        %v571 = vadd.s32 %v518, 4294967240
        %v572 = vlaneseq
        %v573 = vshrl.u32 %v572, 7
        %v574 = vsub.s32 %v571, %v573
        %v575 = vrot.slane %v482, %v574
        %vm576 = vcmask 523712
        %v577 = vsel %vm576, %v575, %v570
        %v578 = vadd.s32 %v518, 4294967232
        %v579 = vlaneseq
        %v580 = vshrl.u32 %v579, 7
        %v581 = vsub.s32 %v578, %v580
        %v582 = vrot.slane %v483, %v581
        %vm583 = vcmask 589312
        %v584 = vsel %vm583, %v582, %v577
        %v585 = vadd.s32 %v518, 4294967224
        %v586 = vlaneseq
        %v587 = vshrl.u32 %v586, 7
        %v588 = vsub.s32 %v585, %v587
        %v589 = vrot.slane %v484, %v588
        %vm590 = vcmask 654912
        %v591 = vsel %vm590, %v589, %v584
        %v599 = vadd.s32 %v518, 4294967216
        %v600 = vlaneseq
        %v601 = vshrl.u32 %v600, 7
        %v602 = vsub.s32 %v599, %v601
        %v603 = vrot.slane %v510, %v602
        %v604 = vadd.s32 %v518, 4294967208
        %v605 = vlaneseq
        %v606 = vshrl.u32 %v605, 7
        %v607 = vsub.s32 %v604, %v606
        %v608 = vrot.slane %v511, %v607
        %vm609 = vcmask 786112
        %v610 = vsel %vm609, %v608, %v603
        %v611 = vadd.s32 %v518, 4294967200
        %v612 = vlaneseq
        %v613 = vshrl.u32 %v612, 7
        %v614 = vsub.s32 %v611, %v613
        %v615 = vrot.slane %v512, %v614
        %vm616 = vcmask 851712
        %v617 = vsel %vm616, %v615, %v610
        %v618 = vadd.s32 %v518, 4294967192
        %v619 = vlaneseq
        %v620 = vshrl.u32 %v619, 7
        %v621 = vsub.s32 %v618, %v620
        %v622 = vrot.slane %v513, %v621
        %vm623 = vcmask 917312
        %v624 = vsel %vm623, %v622, %v617
        %v625 = vadd.s32 %v518, 4294967184
        %v626 = vlaneseq
        %v627 = vshrl.u32 %v626, 7
        %v628 = vsub.s32 %v625, %v627
        %v629 = vrot.slane %v514, %v628
        %vm630 = vcmask 982912
        %v631 = vsel %vm630, %v629, %v624
        %v632 = vadd.s32 %v518, 4294967176
        %v633 = vlaneseq
        %v634 = vshrl.u32 %v633, 7
        %v635 = vsub.s32 %v632, %v634
        %v636 = vrot.slane %v515, %v635
        %vm637 = vcmask 1048512
        %v638 = vsel %vm637, %v636, %v631
        %vm640 = vcmask 64512
        %v641 = vsel %vm640, %v522, %v537
        %vm642 = vcmask 195584
        %v643 = vsel %vm642, %v641, %v560
        %vm644 = vcmask 392192
        %v645 = vsel %vm644, %v643, %v591
        %vm646 = vcmask 654336
        %v647 = vsel %vm646, %v645, %v638
        %v648 = vpack.c.bf16 %v647, %v647
        %v649 = vld [vmem:[%s5] sm:$0xf]
        %v650 = vld [vmem:[%s5 + $0x4] sm:$0xf]
        %v651 = vld [vmem:[%s5 + $0x8] sm:$0xf]
        %v652 = vld [vmem:[%s5 + $0xc] sm:$0xf]
        %v653 = vld [vmem:[%s5 + $0x10] sm:$0xf]
        %v654 = vld [vmem:[%s5 + $0x14] sm:$0xf]
        %v655 = vld [vmem:[%s5 + $0x18] sm:$0xf]
        %v656 = vld [vmem:[%s5 + $0x1c] sm:$0xf]
        %v657 = vld [vmem:[%s5 + $0x20] sm:$0xf]
        %v658 = vld [vmem:[%s5 + $0x24] sm:$0xf]
        %v659 = vld [vmem:[%s5 + $0x28] sm:$0xf]
        %v660 = vld [vmem:[%s5 + $0x2c] sm:$0xf]
        %v661 = vld [vmem:[%s5 + $0x30] sm:$0xf]
        %v662 = vld [vmem:[%s5 + $0x34] sm:$0xf]
        %v663 = vld [vmem:[%s5 + $0x38] sm:$0xf]
        %v664 = vld [vmem:[%s5 + $0x3c] sm:$0xf]
        %v665 = vld [vmem:[%s6] sm:$0x1]
        %v682 = vunpack.c.l.b16 %v649
        %v683 = vunpack.c.l.b16 %v650
        %v684 = vunpack.c.l.b16 %v651
        %v685 = vunpack.c.l.b16 %v652
        %v686 = vunpack.c.l.b16 %v653
        %v687 = vunpack.c.l.b16 %v654
        %v688 = vunpack.c.l.b16 %v655
        %v689 = vunpack.c.l.b16 %v656
        %v690 = vunpack.c.l.b16 %v657
        %v691 = vunpack.c.l.b16 %v658
        %v692 = vunpack.c.l.b16 %v659
        %v693 = vunpack.c.l.b16 %v660
        %v694 = vunpack.c.l.b16 %v661
        %v695 = vunpack.c.l.b16 %v662
        %v696 = vunpack.c.l.b16 %v663
        %v697 = vunpack.c.l.b16 %v664
        %v698 = vpack.c.b16 %v683, %v682
        %v699 = vpack.c.b16 %v685, %v684
        %v700 = vpack.c.b16 %v687, %v686
        %v701 = vpack.c.b16 %v689, %v688
        %v702 = vpack.c.b16 %v691, %v690
        %v703 = vpack.c.b16 %v693, %v692
        %v704 = vpack.c.b16 %v695, %v694
        %v705 = vpack.c.b16 %v697, %v696
        %714 = vmatprep.subr.bf16.mxu0 0
        %715 = vmatpush1.bf16.msra.mxu0 %v705
        %716 = vmatprep.subr.bf16.mxu0 0
        %717 = vmatpush1.bf16.msra.mxu0 %v704
        %718 = vmatprep.subr.bf16.mxu0 0
        %719 = vmatpush1.bf16.msra.mxu0 %v703
        %720 = vmatprep.subr.bf16.mxu0 0
        %721 = vmatpush1.bf16.msra.mxu0 %v702
        %722 = vmatprep.subr.bf16.mxu0 0
        %723 = vmatpush1.bf16.msra.mxu0 %v701
        %724 = vmatprep.subr.bf16.mxu0 0
        %725 = vmatpush1.bf16.msra.mxu0 %v700
        %726 = vmatprep.subr.bf16.mxu0 0
        %727 = vmatpush1.bf16.msra.mxu0 %v699
        %728 = vmatprep.subr.bf16.mxu0 0
        %729 = vmatpush1.bf16.msra.mxu0 %v698
        %730 = vmatprep.subr.bf16.mxu0 0
        %731 = vmatpush2.bf16.msra.mxu0 0
        %732 = vmatprep.subr.bf16.mxu0 0
        %733 = vmatpush2.bf16.msra.mxu0 0
        %734 = vmatprep.subr.bf16.mxu0 0
        %735 = vmatpush2.bf16.msra.mxu0 0
        %736 = vmatprep.subr.bf16.mxu0 0
        %737 = vmatpush2.bf16.msra.mxu0 0
        %738 = vmatprep.subr.bf16.mxu0 0
        %739 = vmatpush2.bf16.msra.mxu0 0
        %740 = vmatprep.subr.bf16.mxu0 0
        %741 = vmatpush2.bf16.msra.mxu0 0
        %742 = vmatprep.subr.bf16.mxu0 0
        %743 = vmatpush2.bf16.msra.mxu0 0
        %744 = vmatprep.subr.bf16.mxu0 0
        %745 = vmatpush2.bf16.msra.mxu0 0
        %746 = vmatprep.mubr.bf16.mxu0 0
        %747 = vmatmul.mubr.bf16.gmra.mxu0 %v648
        %v748 = vpop.f32.mrf.mxu0
        %v749 = vadd.f32 %v665, %v748
        %v750 = vpop.f32.mrf.mxu0
        %v751 = vpop.f32.mrf.mxu0
        %v752 = vpop.f32.mrf.mxu0
        %753 = vdwg.mxu0
        %v754 = vsub.f32 0.0, %v749
        %v755 = vmul.f32 %v754, 1.442695
        %v756 = vpow.pop %v755
        %v757 = vadd.f32 %v756, 1.0
        %v758 = vrcp.pop %v757
        %v759 = vmul.f32 1.0, %v758
        %760 = vst [vmem:[%s396] sm:$0x1] %v759
      $region56: #{_lambda_.1} parent=47 // pred_fallthru
        _
      %p761 = scmp.lt.s32.totalorder %s22, 1
      %s762 = scalar_select %p761, %s22, 1
      %s763 = scalar_lea.vmem %s7, %s762
      // Predicated region
      $region57: #{_lambda_.1} parent=47 // pred_check
        %p764 = pneg %p226
      $region58: #{_lambda_.1} parent=47 // pred_check_branch
        %766 = sbr.rel (%p764) target = $region60
      $region59: #{_lambda_.1} parent=47 // pred_region
        _
      $region60: #{_lambda_.1} parent=47 // pred_fallthru
        _
    $region48: #{_lambda_.1} parent=5 // pred_fallthru
      _
    %p767 = scmp.le.s32.totalorder 2, %s13
    // Predicated region
    $region61: #{_lambda_.1} parent=5 // pred_check
      %p768 = pneg %p767
    $region62: #{_lambda_.1} parent=5 // pred_check_branch
      %770 = sbr.rel (%p768) target = $region64
    $region63: #{_lambda_.1} parent=5 // pred_region
      %s771 = ssub.s32 %s13, 2
      // Predicated region
      $region65: #{_lambda_.1} parent=63 // pred_check
        %p772 = pneg %p232
      $region66: #{_lambda_.1} parent=63 // pred_check_branch
        %774 = sbr.rel (%p772) target = $region68
      $region67: #{_lambda_.1} parent=63 // pred_region
        %p775 = scmp.lt.s32.totalorder %s24, 1
        %s776 = scalar_select %p775, %s24, 1
        %s777 = scalar_lea.vmem %s7, %s776
      $region68: #{_lambda_.1} parent=63 // pred_fallthru
        _
    $region64: #{_lambda_.1} parent=5 // pred_fallthru
      _
  $region6: #{_lambda_.1} parent=0 // loop_footer
    %s17 = sadd.s32 1, %s13
  $region7: #{_lambda_.1} parent=0 // loop_footer_branch
    %12 = sbr.rel target = $region3
  $region8: #{_lambda_.1} parent=0 // loop_exit
    _

</llo_original>
